<compile_context>
chip_gen: v7x
topology: tpu7x:2x2x1
jax: 0.10.0
libtpu: 0.0.40
codegen_flags: <defaults>
</compile_context>

<pallas_src>
import numpy as np
import jax
import jax.numpy as jnp
from jax import lax
from jax.experimental import pallas as pl
from jax.experimental.pallas import tpu as pltpu


# ----------------------------- Pallas kernels -------------------------------

def _down_kernel(xp_ref, w_ref, u_ref):
    """LeakyReLU(0.2) + Conv2d(k4,s2,p1) (as a channel/tap matmul over im2col
    patches) + ReLU, fused. Layout: taps on sublanes, batch*spatial on lanes."""
    xp = xp_ref[...]
    xp = jnp.where(xp > 0, xp, 0.2 * xp)                  # LeakyReLU (commutes with im2col)
    d = jnp.dot(w_ref[...], xp, preferred_element_type=jnp.float32)
    u_ref[...] = jnp.maximum(d, 0.0).astype(u_ref.dtype)  # uprelu fused here


def _up_kernel(up_ref, w_ref, b_ref, x_ref, out_ref):
    """ConvTranspose2d(k4,s2,p1) (as a matmul over dilated im2col patches) +
    folded eval-mode BatchNorm + channel concat with the skip input, fused.
    Output layout (2, C, N): slot 0 = skip x, slot 1 = BN(upconv(...))."""
    y = jnp.dot(w_ref[...], up_ref[...], preferred_element_type=jnp.float32)
    y = y + b_ref[...]                                     # BN bias (scale folded into W)
    out_ref[0] = x_ref[...].astype(out_ref.dtype)          # skip branch
    out_ref[1] = y.astype(out_ref.dtype)                   # model(x) branch


# ------------------------------ glue helpers -------------------------------

def _pick_tile(n, max_tile=2048):
    """Largest lane tile (multiple of 128) dividing n, capped at max_tile."""
    if n <= max_tile:
        return n
    for t in range(max_tile, 127, -128):
        if n % t == 0:
            return t
    return n


def _im2col(x, k, stride, pad):
    """x: (B, C, H, W) -> patches (C*k*k, B*Ho*Wo); rows ordered (c, ky, kx),
    columns ordered (b, oy, ox). Pure data movement (stays outside the kernel)."""
    B, C, H, W = x.shape
    Ho = (H + 2 * pad - k) // stride + 1
    Wo = (W + 2 * pad - k) // stride + 1
    xp = jnp.pad(x, ((0, 0), (0, 0), (pad, pad), (pad, pad)))
    taps = []
    for ky in range(k):
        for kx in range(k):
            win = lax.slice(
                xp, (0, 0, ky, kx),
                (B, C, ky + stride * (Ho - 1) + 1, kx + stride * (Wo - 1) + 1),
                (1, 1, stride, stride))
            taps.append(win)                                # (B, C, Ho, Wo)
    cols = jnp.stack(taps, axis=2)                          # (B, C, k*k, Ho, Wo)
    cols = cols.transpose(1, 2, 0, 3, 4).reshape(C * k * k, B * Ho * Wo)
    return cols, Ho, Wo


def init_params(key, input_nc, inner_nc, outer_nc):
    ks = jax.random.split(key, 2)
    # Conv2d(input_nc, inner_nc, 4, 2, 1, bias=False): weight (inner, in, 4, 4)
    w_down = jax.random.normal(ks[0], (inner_nc, input_nc, 4, 4), jnp.float32) * 0.1
    # ConvTranspose2d(inner_nc, outer_nc, 4, 2, 1, bias=False): weight (inner, outer, 4, 4)
    w_up = jax.random.normal(ks[1], (inner_nc, outer_nc, 4, 4), jnp.float32) * 0.1
    # eval-mode BatchNorm2d(outer_nc) parameters / running statistics
    gamma = 1.0 + 0.1 * jnp.arange(outer_nc, dtype=jnp.float32)
    beta = 0.05 * jnp.arange(outer_nc, dtype=jnp.float32)
    mean = 0.01 * jnp.arange(outer_nc, dtype=jnp.float32)
    var = 1.0 + 0.02 * jnp.arange(outer_nc, dtype=jnp.float32)
    return w_down, w_up, gamma, beta, mean, var


# ------------------------------- wrapper ------------------------------------

def unet_innermost_block(x_nchw, params, eps=1e-5):
    """cat([x, BN(ConvT(ReLU(Conv(LeakyReLU(x)))))], 1) — innermost UNet block."""
    w_down, w_up, bn_gamma, bn_beta, bn_mean, bn_var = params
    B, C, H, W = x_nchw.shape
    inner = w_down.shape[0]
    outer = w_up.shape[1]
    assert C == outer, "innermost block uses input_nc == outer_nc (input_nc=None)"

    # ---------- kernel 1: LeakyReLU + downconv (matmul) + ReLU ----------------
    xp, Hd, Wd = _im2col(x_nchw, k=4, stride=2, pad=1)      # (C*16, B*Hd*Wd)
    ck1, n1 = xp.shape
    wd_flat = w_down.reshape(inner, ck1)                    # (inner, C*4*4)
    t1 = _pick_tile(n1)

    u = pl.pallas_call(
        _down_kernel,
        out_shape=jax.ShapeDtypeStruct((inner, n1), jnp.float32),
        grid_spec=pltpu.PrefetchScalarGridSpec(
            num_scalar_prefetch=0,
            grid=(n1 // t1,),
            in_specs=[
                pl.BlockSpec((ck1, t1), lambda j: (0, j)),      # im2col patches
                pl.BlockSpec((inner, ck1), lambda j: (0, 0)),   # down weight (resident)
            ],
            out_specs=pl.BlockSpec((inner, t1), lambda j: (0, j)),
        ),
        compiler_params=pltpu.CompilerParams(dimension_semantics=("parallel",)),
    )(xp, wd_flat)

    # ---------- ConvTranspose2d == Conv2d(flip(W), s1, p2) on 2x-dilated u ----
    u_sp = u.reshape(inner, B, Hd, Wd).transpose(1, 0, 2, 3)    # (B, inner, Hd, Wd)
    u_dil = jnp.zeros((B, inner, 2 * Hd - 1, 2 * Wd - 1), jnp.float32)
    u_dil = u_dil.at[:, :, ::2, ::2].set(u_sp)
    up_pat, Ho, Wo = _im2col(u_dil, k=4, stride=1, pad=2)       # (inner*16, B*H*W)
    ck2, n2 = up_pat.shape

    # fold eval-mode BatchNorm scale into the (flipped, transposed) up weight
    scale = bn_gamma / jnp.sqrt(bn_var + eps)                   # (outer,)
    w_up_conv = jnp.flip(w_up, axis=(2, 3)).transpose(1, 0, 2, 3)  # (outer, inner, 4, 4)
    wu_flat = scale[:, None] * w_up_conv.reshape(outer, ck2)    # (outer, inner*16)
    bn_bias = (bn_beta - scale * bn_mean)[:, None]              # (outer, 1)

    x_flat = x_nchw.transpose(1, 0, 2, 3).reshape(C, B * H * W)  # (C, B*H*W)
    t2 = _pick_tile(n2)

    # ---------- kernel 2: upconv (matmul) + BN + skip concat ------------------
    out2 = pl.pallas_call(
        _up_kernel,
        out_shape=jax.ShapeDtypeStruct((2, C, n2), jnp.float32),
        grid_spec=pltpu.PrefetchScalarGridSpec(
            num_scalar_prefetch=0,
            grid=(n2 // t2,),
            in_specs=[
                pl.BlockSpec((ck2, t2), lambda j: (0, j)),      # dilated im2col patches
                pl.BlockSpec((outer, ck2), lambda j: (0, 0)),   # up weight (BN-scaled)
                pl.BlockSpec((outer, 1), lambda j: (0, 0)),     # BN bias
                pl.BlockSpec((C, t2), lambda j: (0, j)),        # skip input x
            ],
            out_specs=pl.BlockSpec((2, C, t2), lambda j: (0, 0, j)),
        ),
        compiler_params=pltpu.CompilerParams(dimension_semantics=("parallel",)),
    )(up_pat, wu_flat, bn_bias, x_flat)

    # (2, C, B, H, W): slot 0 = x, slot 1 = model(x)  ->  (B, 2*C, H, W)
    out = out2.reshape(2, C, B, Ho, Wo).transpose(2, 0, 1, 3, 4).reshape(B, 2 * C, Ho, Wo)
    return out


# ------------------------------ pure-JAX reference --------------------------

def _reference(x, params, eps=1e-5):
    w_down, w_up, bn_gamma, bn_beta, bn_mean, bn_var = params
    h = jnp.where(x > 0, x, 0.2 * x)                            # LeakyReLU(0.2)
    d = lax.conv_general_dilated(
        h, w_down, window_strides=(2, 2), padding=((1, 1), (1, 1)),
        dimension_numbers=('NCHW', 'OIHW', 'NCHW'),
        precision=lax.Precision.HIGHEST)
    u = jnp.maximum(d, 0.0)                                     # ReLU
    w_up_conv = jnp.flip(w_up, axis=(2, 3)).transpose(1, 0, 2, 3)
    y = lax.conv_general_dilated(                               # ConvTranspose2d(4,2,1)
        u, w_up_conv, window_strides=(1, 1), padding=((2, 2), (2, 2)),
        lhs_dilation=(2, 2),
        dimension_numbers=('NCHW', 'OIHW', 'NCHW'),
        precision=lax.Precision.HIGHEST)
    scale = bn_gamma / jnp.sqrt(bn_var + eps)
    y = y * scale[None, :, None, None] + (bn_beta - scale * bn_mean)[None, :, None, None]
    return jnp.concatenate([x, y], axis=1)


if __name__ == "__main__":
    key = jax.random.PRNGKey(0)
    k_x, k_p = jax.random.split(key)

    B, outer_nc, inner_nc, H, W = 2, 4, 8, 16, 16
    x = jax.random.normal(k_x, (B, outer_nc, H, W), jnp.float32)
    params = init_params(k_p, outer_nc, inner_nc, outer_nc)

    out = unet_innermost_block(x, params)
    jax.block_until_ready(out)

    ref = _reference(x, params)
    # Tolerance allows for the MXU's multi-pass f32 matmul path vs XLA's conv path.
    np.testing.assert_allclose(np.asarray(out), np.asarray(ref), rtol=1e-2, atol=1e-2)
    assert out.shape == (B, 2 * outer_nc, H, W)

    print("KERNEL_OK")
</pallas_src>

<mosaic_0001>
module attributes {stable_mosaic.version = 11 : i64} {
  func.func @_down_kernel(%arg0: i32, %arg1: memref<64x128xf32, #tpu.memory_space<vmem>>, %arg2: memref<8x64xf32, #tpu.memory_space<vmem>>, %arg3: memref<8x128xf32, #tpu.memory_space<vmem>>) attributes {dimension_semantics = [#tpu.dimension_semantics<parallel>], iteration_bounds = array<i64: 1>, scalar_prefetch = 0 : i64, scratch_operands = 0 : i64, tpu.core_type = #tpu.core_type<tc>, window_params = [{transform_indices = @transform_0, window_bounds = array<i64: 64, 128>}, {pipeline_mode = #tpu.pipeline_mode<synchronous>, transform_indices = @transform_1, window_bounds = array<i64: 8, 64>}, {transform_indices = @transform_2, window_bounds = array<i64: 8, 128>}]} {
    %c0 = arith.constant 0 : index
    %c0_0 = arith.constant 0 : index
    %0 = vector.load %arg1[%c0, %c0_0] : memref<64x128xf32, #tpu.memory_space<vmem>>, vector<64x128xf32>
    %cst = arith.constant 0.000000e+00 : f32
    %1 = vector.broadcast %cst : f32 to vector<64x128xf32>
    %2 = arith.cmpf ogt, %0, %1 : vector<64x128xf32>
    %cst_1 = arith.constant 2.000000e-01 : f32
    %3 = vector.broadcast %cst_1 : f32 to vector<64x128xf32>
    %4 = arith.mulf %3, %0 : vector<64x128xf32>
    %5 = arith.select %2, %0, %4 : vector<64x128xi1>, vector<64x128xf32>
    %c0_2 = arith.constant 0 : index
    %c0_3 = arith.constant 0 : index
    %6 = vector.load %arg2[%c0_2, %c0_3] : memref<8x64xf32, #tpu.memory_space<vmem>>, vector<8x64xf32>
    %cst_4 = arith.constant dense<0.000000e+00> : vector<8x128xf32>
    %7 = tpu.matmul %6, %5, %cst_4 {dimension_numbers = #tpu.dot_dimension_numbers<[1], [0], [0], [1], [0, 0, 1, 1], [], []>} : vector<8x64xf32>, vector<64x128xf32>, vector<8x128xf32> -> vector<8x128xf32>
    %cst_5 = arith.constant 0.000000e+00 : f32
    %8 = vector.broadcast %cst_5 : f32 to vector<8x128xf32>
    %9 = arith.maximumf %7, %8 : vector<8x128xf32>
    %c0_6 = arith.constant 0 : index
    %c0_7 = arith.constant 0 : index
    %10 = vector.load %arg3[%c0_6, %c0_7] : memref<8x128xf32, #tpu.memory_space<vmem>>, vector<8x128xf32>
    tpu.vector_store %arg3[%c0_6, %c0_7], %9 {strides = array<i32>} : memref<8x128xf32, #tpu.memory_space<vmem>>, vector<8x128xf32>,
    return
  }
  func.func @transform_0(%arg0: i32) -> (i32, i32) {
    %c0_i32 = arith.constant 0 : i32
    %c0_i32_0 = arith.constant 0 : i32
    return %c0_i32, %arg0 : i32, i32
  }
  func.func @transform_1(%arg0: i32) -> (i32, i32) {
    %c0_i32 = arith.constant 0 : i32
    %c0_i32_0 = arith.constant 0 : i32
    %c0_i32_1 = arith.constant 0 : i32
    return %c0_i32, %c0_i32_0 : i32, i32
  }
  func.func @transform_2(%arg0: i32) -> (i32, i32) {
    %c0_i32 = arith.constant 0 : i32
    %c0_i32_0 = arith.constant 0 : i32
    return %c0_i32, %arg0 : i32, i32
  }
}

</mosaic_0001>

<llo_original>
// kernel: tpu_custom_call.1
$region0: #{tpu_custom_call.1}
  #allocation0 [shape = 'u32[]', space=smem, size = 0x4, offset = 0x4, fixed_abs, tag = 'smem constant byte address 0x4 - core index']
  #allocation1 [shape = 'u32[144,128]{1,0:T(1,128)}', space=vmem, size = 0x12000, scoped, tag = 'internal scratch']
  %s0 = inlined_call_operand.hbm [shape: f32[64,128], index: 0, kind: input, shape index: {}]
  %s1 = inlined_call_operand.hbm [shape: f32[8,64], index: 1, kind: input, shape index: {}]
  %s2 = inlined_call_operand.hbm [shape: f32[8,128], index: 2, kind: output, shape index: {}]
  %s3 = sld [smem:[#allocation0]]
  $region26: #{tpu_custom_call.1} parent=0
    _
  %s5 = ssub.s32 1, %s3
  %s6 = scalar_select 0, %s5, %s3
  $region1: #{tpu_custom_call.1} parent=0
    #allocation2 [shape = 'u8[32768]{0}', space=vmem, size = 0x8000, scoped, tag = 'input window, operand 0, single buffered']
    #allocation3 [shape = 's32[1]{0}', space=sflag, size = 0x4, scoped, tag = 'scoped memory for tpu_custom_call.1']
    #allocation4 [shape = 's32[1]{0}', space=sflag, size = 0x4, scoped, tag = 'scoped memory for tpu_custom_call.1']
    #allocation5 [shape = 'u8[4096]{0}', space=vmem, size = 0x1000, scoped, tag = 'input window, operand 1, single buffered']
    #allocation6 [shape = 's32[1]{0}', space=sflag, size = 0x4, scoped, tag = 'scoped memory for tpu_custom_call.1']
    #allocation7 [shape = 'u8[4096]{0}', space=vmem, size = 0x1000, scoped, tag = 'output window, operand 0, single buffered']
    %7 = vsyncpa [#allocation3], 0
    %8 = vsyncpa [#allocation6], 0
    %9 = vsyncpa [#allocation4], 0
    // Predicated region
    $region2: #{tpu_custom_call.1} parent=1 // pred_check
      _
    $region3: #{tpu_custom_call.1} parent=1 // pred_check_branch
      %11 = sbr.rel (0) target = $region5
    $region4: #{tpu_custom_call.1} parent=1 // pred_region
      %s13 = ssub.s32 1024, 1024
      %14 = vsyncadd [#allocation3], %s13
      %s15 = sshll.u32 [#allocation2], 4
      %s16 = int_to_ptr.vmem [resolvable:$true] %s15
      %21 = dma.hbm_to_vmem [thread:$0]  %s0, 1024, %s16, [#allocation3], 128, 128, 8
    $region5: #{tpu_custom_call.1} parent=1 // pred_fallthru
      _
    // Predicated region
    $region6: #{tpu_custom_call.1} parent=1 // pred_check
      _
    $region7: #{tpu_custom_call.1} parent=1 // pred_check_branch
      %23 = sbr.rel (0) target = $region9
    $region8: #{tpu_custom_call.1} parent=1 // pred_region
      %s25 = ssub.s32 128, 128
      %26 = vsyncadd [#allocation6], %s25
      %s28 = sshll.u32 [#allocation5], 4
      %s29 = int_to_ptr.vmem [resolvable:$true] %s28
      %31 = dma.hbm_to_vmem [thread:$0]  %s1, 128, %s29, [#allocation6]
    $region9: #{tpu_custom_call.1} parent=1 // pred_fallthru
      _
    // Predicated region
    $region10: #{tpu_custom_call.1} parent=1 // pred_check
      _
    $region11: #{tpu_custom_call.1} parent=1 // pred_check_branch
      %33 = sbr.rel (0) target = $region13
    $region12: #{tpu_custom_call.1} parent=1 // pred_region
      %34 = dma.done [#allocation3], 1024
    $region13: #{tpu_custom_call.1} parent=1 // pred_fallthru
      _
    // Predicated region
    $region14: #{tpu_custom_call.1} parent=1 // pred_check
      _
    $region15: #{tpu_custom_call.1} parent=1 // pred_check_branch
      %36 = sbr.rel (0) target = $region17
    $region16: #{tpu_custom_call.1} parent=1 // pred_region
      %37 = dma.done [#allocation6], 128
    $region17: #{tpu_custom_call.1} parent=1 // pred_fallthru
      _
    %v38 = vld [vmem:[#allocation2] sm:$0xff]
    %v39 = vld [vmem:[#allocation2 + $0x8] sm:$0xff]
    %v40 = vld [vmem:[#allocation2 + $0x10] sm:$0xff]
    %v41 = vld [vmem:[#allocation2 + $0x18] sm:$0xff]
    %v42 = vld [vmem:[#allocation2 + $0x20] sm:$0xff]
    %v43 = vld [vmem:[#allocation2 + $0x28] sm:$0xff]
    %v44 = vld [vmem:[#allocation2 + $0x30] sm:$0xff]
    %v45 = vld [vmem:[#allocation2 + $0x38] sm:$0xff]
    %vm46 = vcmp.gt.f32.partialorder %v38, 0.0
    %vm47 = vcmp.gt.f32.partialorder %v39, 0.0
    %vm48 = vcmp.gt.f32.partialorder %v40, 0.0
    %vm49 = vcmp.gt.f32.partialorder %v41, 0.0
    %vm50 = vcmp.gt.f32.partialorder %v42, 0.0
    %vm51 = vcmp.gt.f32.partialorder %v43, 0.0
    %vm52 = vcmp.gt.f32.partialorder %v44, 0.0
    %vm53 = vcmp.gt.f32.partialorder %v45, 0.0
    %v54 = vmul.f32 %v38, 0.2
    %v55 = vmul.f32 %v39, 0.2
    %v56 = vmul.f32 %v40, 0.2
    %v57 = vmul.f32 %v41, 0.2
    %v58 = vmul.f32 %v42, 0.2
    %v59 = vmul.f32 %v43, 0.2
    %v60 = vmul.f32 %v44, 0.2
    %v61 = vmul.f32 %v45, 0.2
    %v62 = vsel %vm46, %v38, %v54
    %v63 = vsel %vm47, %v39, %v55
    %v64 = vsel %vm48, %v40, %v56
    %v65 = vsel %vm49, %v41, %v57
    %v66 = vsel %vm50, %v42, %v58
    %v67 = vsel %vm51, %v43, %v59
    %v68 = vsel %vm52, %v44, %v60
    %v69 = vsel %vm53, %v45, %v61
    %v70 = vld [vmem:[#allocation5] sm:$0xff]
    %vm71 = vcmask 523264
    %v73 = vsel %vm71, %v70, 0
    %75 = vmatprep.subr.mxu0 0.0
    %76 = vmatpush1.msra.mxu0 %v62
    %77 = vmatprep.subr.mxu0 0.0
    %78 = vmatpush1.msra.mxu0 %v63
    %79 = vmatprep.subr.mxu0 0.0
    %80 = vmatpush1.msra.mxu0 %v64
    %81 = vmatprep.subr.mxu0 0.0
    %82 = vmatpush1.msra.mxu0 %v65
    %83 = vmatprep.subr.mxu0 0.0
    %84 = vmatpush1.msra.mxu0 %v66
    %85 = vmatprep.subr.mxu0 0.0
    %86 = vmatpush1.msra.mxu0 %v67
    %87 = vmatprep.subr.mxu0 0.0
    %88 = vmatpush1.msra.mxu0 %v68
    %89 = vmatprep.subr.mxu0 0.0
    %90 = vmatpush1.msra.mxu0 %v69
    %91 = vmatprep.subr.mxu0 0.0
    %92 = vmatpush1.msra.mxu0 0.0
    %93 = vmatprep.subr.mxu0 0.0
    %94 = vmatpush1.msra.mxu0 0.0
    %95 = vmatprep.subr.mxu0 0.0
    %96 = vmatpush1.msra.mxu0 0.0
    %97 = vmatprep.subr.mxu0 0.0
    %98 = vmatpush1.msra.mxu0 0.0
    %99 = vmatprep.subr.mxu0 0.0
    %100 = vmatpush1.msra.mxu0 0.0
    %101 = vmatprep.subr.mxu0 0.0
    %102 = vmatpush1.msra.mxu0 0.0
    %103 = vmatprep.subr.mxu0 0.0
    %104 = vmatpush1.msra.mxu0 0.0
    %105 = vmatprep.subr.mxu0 0.0
    %106 = vmatpush1.msra.mxu0 0.0
    %107 = vmatprep.subr.mxu0 0.0
    %108 = vmatpush1.msra.mxu0 0.0
    %109 = vmatprep.subr.mxu0 0.0
    %110 = vmatpush1.msra.mxu0 0.0
    %111 = vmatprep.subr.mxu0 0.0
    %112 = vmatpush1.msra.mxu0 0.0
    %113 = vmatprep.subr.mxu0 0.0
    %114 = vmatpush1.msra.mxu0 0.0
    %115 = vmatprep.subr.mxu0 0.0
    %116 = vmatpush1.msra.mxu0 0.0
    %117 = vmatprep.subr.mxu0 0.0
    %118 = vmatpush1.msra.mxu0 0.0
    %119 = vmatprep.subr.mxu0 0.0
    %120 = vmatpush1.msra.mxu0 0.0
    %121 = vmatprep.subr.mxu0 0.0
    %122 = vmatpush1.msra.mxu0 0.0
    %123 = vmatprep.subr.mxu0 0.0
    %124 = vmatpush1.msra.mxu0 0.0
    %125 = vmatprep.subr.mxu0 0.0
    %126 = vmatpush1.msra.mxu0 0.0
    %127 = vmatprep.subr.mxu0 0.0
    %128 = vmatpush1.msra.mxu0 0.0
    %129 = vmatprep.subr.mxu0 0.0
    %130 = vmatpush1.msra.mxu0 0.0
    %131 = vmatprep.subr.mxu0 0.0
    %132 = vmatpush1.msra.mxu0 0.0
    %133 = vmatprep.subr.mxu0 0.0
    %134 = vmatpush1.msra.mxu0 0.0
    %135 = vmatprep.subr.mxu0 0.0
    %136 = vmatpush1.msra.mxu0 0.0
    %137 = vmatprep.subr.mxu0 0.0
    %138 = vmatpush1.msra.mxu0 0.0
    %139 = vmatprep.mubr.f32.mxu0 0.0
    %140 = vmatmul.mubr.f32.gmra.mrb[0].mxu0 %v73
    %v141 = vpop.f32.mrb[0].mxu0
    %v142 = vadd.f32 0.0, %v141
    %v143 = vpop.f32.mrb[0].mxu0
    %144 = vdwg.mxu0
    %v145 = vmax.f32 %v142, 0.0
    %146 = vst [vmem:[#allocation7] sm:$0xff] %v145
    // Predicated region
    $region18: #{tpu_custom_call.1} parent=1 // pred_check
      _
    $region19: #{tpu_custom_call.1} parent=1 // pred_check_branch
      %148 = sbr.rel (0) target = $region21
    $region20: #{tpu_custom_call.1} parent=1 // pred_region
      %s150 = ssub.s32 128, 128
      %151 = vsyncadd [#allocation4], %s150
      %s153 = sshll.u32 [#allocation7], 4
      %s154 = int_to_ptr.vmem [resolvable:$true] %s153
      %156 = dma.vmem_to_hbm [thread:$0]  %s154, 128, %s2, [#allocation4]
    $region21: #{tpu_custom_call.1} parent=1 // pred_fallthru
      _
    // Predicated region
    $region22: #{tpu_custom_call.1} parent=1 // pred_check
      _
    $region23: #{tpu_custom_call.1} parent=1 // pred_check_branch
      %158 = sbr.rel (0) target = $region25
    $region24: #{tpu_custom_call.1} parent=1 // pred_region
      %159 = dma.done [#allocation4], 128
    $region25: #{tpu_custom_call.1} parent=1 // pred_fallthru
      _
    %160 = vsyncpa [#allocation3], 1
    %161 = vsyncpa [#allocation6], 1
    %162 = vsyncpa [#allocation4], 1

</llo_original>
